<compile_context>
chip_gen: v7x
topology: tpu7x:2x2x1
jax: 0.10.0
libtpu: 0.0.40
codegen_flags: <defaults>
</compile_context>

<pallas_src>
import functools

import jax
import jax.numpy as jnp
from jax.experimental import pallas as pl
from jax.experimental.pallas import tpu as pltpu


def _round_up(x: int, m: int) -> int:
    return ((x + m - 1) // m) * m


def _pick_tile(dim: int, cap: int) -> int:
    """Largest multiple of 128 that is <= cap and divides dim (dim % 128 == 0)."""
    t = max(128, (min(cap, dim) // 128) * 128)
    while dim % t != 0:
        t -= 128
    return t


# --------------------------------------------------------------------------
# Optional pass 1 (only when the batch grid has >1 tile): exp(weights) once,
# downcast to the MXU operand dtype.  Pure mem-bound elementwise pass, so it
# uses its own (large) tiles independent of the GEMM tiles.
# --------------------------------------------------------------------------
def _exp_cast_kernel(w_ref, o_ref):
    # exp in f32 on the EUP, downcast only for the MXU operand feed.
    o_ref[...] = jnp.exp(w_ref[...]).astype(o_ref.dtype)


def _exp_weights(w_pad, out_dtype):
    fi, fo = w_pad.shape
    ek = _pick_tile(fi, 512)
    en = _pick_tile(fo, 1024)
    return pl.pallas_call(
        _exp_cast_kernel,
        out_shape=jax.ShapeDtypeStruct((fi, fo), out_dtype),
        grid=(fi // ek, fo // en),
        in_specs=[pl.BlockSpec((ek, en), lambda i, j: (i, j))],
        out_specs=pl.BlockSpec((ek, en), lambda i, j: (i, j)),
        compiler_params=pltpu.CompilerParams(
            dimension_semantics=("parallel", "parallel")),
    )(w_pad)


# --------------------------------------------------------------------------
# Pass 2: tiled x_shifted @ exp(W) with f32 accumulation directly in the
# (VMEM-resident) output tile and an epilogue clip.
# NOTE: the init/accumulate/finalize pattern below requires the reduction (K)
# axis to stay the innermost, "arbitrary" grid axis.
# --------------------------------------------------------------------------
def _exu_fused_kernel(x_ref, w_ref, o_ref, *, n, mxu_dtype):
    """x_ref: bf16 (tm,tk) pre-shifted LHS; w_ref: f32 raw weights (tk,tn)."""
    k = pl.program_id(2)

    @pl.when(k == 0)
    def _init():
        o_ref[...] = jnp.zeros_like(o_ref)

    # exp on the EUP (idle slot in an MXU-bound bundle); downcast for the MXU.
    ew = jnp.exp(w_ref[...]).astype(mxu_dtype)
    o_ref[...] += jnp.dot(x_ref[...], ew, preferred_element_type=jnp.float32)

    @pl.when(k == pl.num_programs(2) - 1)
    def _finalize():
        # relu + clamp(0, n) == clip to [0, n]; only after the full reduction.
        o_ref[...] = jnp.clip(o_ref[...], 0.0, jnp.float32(n))


def _exu_precomp_kernel(x_ref, ew_ref, o_ref, *, n):
    """x_ref: bf16 pre-shifted LHS; ew_ref: bf16 precomputed exp(weights)."""
    k = pl.program_id(2)

    @pl.when(k == 0)
    def _init():
        o_ref[...] = jnp.zeros_like(o_ref)

    o_ref[...] += jnp.dot(x_ref[...], ew_ref[...],
                          preferred_element_type=jnp.float32)

    @pl.when(k == pl.num_programs(2) - 1)
    def _finalize():
        o_ref[...] = jnp.clip(o_ref[...], 0.0, jnp.float32(n))


def exu_forward(inputs, weights, bias, n: int = 1,
                matmul_dtype=jnp.bfloat16):
    """ExU forward: clip((inputs - bias) @ exp(weights), 0, n).

    inputs: (B, F_in) f32, weights: (F_in, F_out) f32, bias: (F_in,) f32.
    """
    B, F_in = inputs.shape
    F_out = weights.shape[1]

    # Tile targets: 512-deep K to amortize the f32 output-tile RMW, 256/512
    # wide N tiles (MXU-native), clamped to (padded) problem size with TPU
    # granularity: sublane multiples of 8, lane multiples of 128.
    tm = min(512, _round_up(B, 8))
    tk = min(512, _round_up(F_in, 128))
    tn = min(512 if F_out >= 1024 else 256, _round_up(F_out, 128))

    # v7x has 2 TensorCores sharded over the "parallel" grid axes: try to keep
    # at least 2 parallel grid points when the problem allows it.  Harmless on
    # v5e / v6e (single TC).
    i_grid = (B + tm - 1) // tm
    j_grid = (F_out + tn - 1) // tn
    if i_grid * j_grid == 1:
        if B >= 16:
            tm = _round_up((B + 1) // 2, 8)
        elif F_out > 128:
            tn = _round_up((F_out + 1) // 2, 128)

    b_p = _round_up(B, tm)
    fi_p = _round_up(F_in, tk)
    fo_p = _round_up(F_out, tn)
    i_grid = b_p // tm

    # Hoist the bias subtract + bf16 downcast of the LHS out of the hot K loop.
    # Subtract in f32, cast, and pad AFTER the subtract: padded K rows of the
    # weights become exp(0)=1, so the LHS must be exactly 0 there.
    x_shifted = (inputs.astype(jnp.float32)
                 - bias.astype(jnp.float32)[None, :]).astype(matmul_dtype)
    x_pad = jnp.pad(x_shifted, ((0, b_p - B), (0, fi_p - F_in)))
    w_pad = jnp.pad(weights.astype(jnp.float32),
                    ((0, fi_p - F_in), (0, fo_p - F_out)))

    if i_grid == 1:
        # Each weight tile is streamed exactly once: fuse exp into the GEMM
        # (EUP is free) and skip the extra weight-matrix HBM round trip.
        kernel = functools.partial(_exu_fused_kernel, n=n, mxu_dtype=matmul_dtype)
        w_operand = w_pad
        w_elem_bytes = 4
    else:
        # Weights are reused across batch tiles: precompute bf16 exp(W) once.
        kernel = functools.partial(_exu_precomp_kernel, n=n)
        w_operand = _exp_weights(w_pad, matmul_dtype)
        w_elem_bytes = 2

    # Explicit VMEM budget (double-buffered x / w tiles + f32 output tile),
    # capped at v7x's 64 MiB physical VMEM.
    est = 2 * (tm * tk * 2 + tk * tn * w_elem_bytes + tm * tn * 4)
    vmem_limit = int(min(64 * 1024 * 1024, max(2 * est, 16 * 1024 * 1024)))

    out_pad = pl.pallas_call(
        kernel,
        out_shape=jax.ShapeDtypeStruct((b_p, fo_p), jnp.float32),
        grid=(b_p // tm, fo_p // tn, fi_p // tk),
        in_specs=[
            pl.BlockSpec((tm, tk), lambda i, j, k: (i, k)),   # bf16 shifted x
            pl.BlockSpec((tk, tn), lambda i, j, k: (k, j)),   # W (f32) / exp(W) (bf16)
        ],
        out_specs=pl.BlockSpec((tm, tn), lambda i, j, k: (i, j)),
        compiler_params=pltpu.CompilerParams(
            dimension_semantics=("parallel", "parallel", "arbitrary"),
            vmem_limit_bytes=vmem_limit),
    )(x_pad, w_operand)

    return out_pad[:B, :F_out]


def _trunc_normal(key, shape, mean=0.0, std=1.0):
    # Stand-in for torch.nn.init.trunc_normal_ (default a=-2, b=2 in value space).
    lower = (-2.0 - mean) / std
    upper = (2.0 - mean) / std
    z = jax.random.truncated_normal(key, lower, upper, shape, dtype=jnp.float32)
    return mean + std * z


def _reference(x, weights, bias, n):
    # Same precision policy as the kernel: f32 exp / subtract, bf16 MXU
    # operands, f32 accumulation, clip after the full reduction.
    ew = jnp.exp(weights).astype(jnp.bfloat16)
    sh = (x - bias[None, :]).astype(jnp.bfloat16)
    return jnp.clip(jnp.dot(sh, ew, preferred_element_type=jnp.float32),
                    0.0, float(n))


if __name__ == "__main__":
    key = jax.random.PRNGKey(0)

    # --- Case 1: small shapes matching the ExU module defaults (fused path) ---
    batch, in_features, out_features, n_clamp = 8, 32, 16, 1
    k_x, k_w, k_b, key = jax.random.split(key, 4)
    x = jax.random.normal(k_x, (batch, in_features), dtype=jnp.float32)
    weights = _trunc_normal(k_w, (in_features, out_features), mean=4.0, std=0.5)
    bias = _trunc_normal(k_b, (in_features,), mean=0.0, std=0.5)

    out = jax.block_until_ready(exu_forward(x, weights, bias, n=n_clamp))
    ref = _reference(x, weights, bias, n_clamp)

    assert out.shape == (batch, out_features)
    assert bool(jnp.all(out >= 0.0)) and bool(jnp.all(out <= float(n_clamp)))
    assert jnp.allclose(out, ref, rtol=2e-3, atol=2e-3), "mismatch (fused path)"

    # --- Case 2: larger / unaligned shapes exercising padding + the two-pass
    #     (precomputed exp(W)) path with a multi-tile batch grid ---
    batch2, in2, out2 = 640, 300, 200
    k_x, k_w, k_b, key = jax.random.split(key, 4)
    x2 = jax.random.normal(k_x, (batch2, in2), dtype=jnp.float32)
    w2 = _trunc_normal(k_w, (in2, out2), mean=4.0, std=0.5)
    b2 = _trunc_normal(k_b, (in2,), mean=0.0, std=0.5)

    out2_arr = jax.block_until_ready(exu_forward(x2, w2, b2, n=n_clamp))
    ref2 = _reference(x2, w2, b2, n_clamp)

    assert out2_arr.shape == (batch2, out2)
    assert bool(jnp.all(out2_arr >= 0.0)) and bool(jnp.all(out2_arr <= 1.0))
    assert jnp.allclose(out2_arr, ref2, rtol=2e-3, atol=2e-3), "mismatch (two-pass path)"

    print("KERNEL_OK")
</pallas_src>

<mosaic_0001>
module attributes {stable_mosaic.version = 11 : i64} {
  func.func @_exu_fused_kernel(%arg0: i32, %arg1: i32, %arg2: i32, %arg3: memref<8x128xbf16, #tpu.memory_space<vmem>>, %arg4: memref<128x128xf32, #tpu.memory_space<vmem>>, %arg5: memref<8x128xf32, #tpu.memory_space<vmem>>) attributes {dimension_semantics = [#tpu.dimension_semantics<parallel>, #tpu.dimension_semantics<parallel>, #tpu.dimension_semantics<arbitrary>], iteration_bounds = array<i64: 1, 1, 1>, scalar_prefetch = 0 : i64, scratch_operands = 0 : i64, tpu.core_type = #tpu.core_type<tc>, window_params = [{transform_indices = @transform_0, window_bounds = array<i64: 8, 128>}, {transform_indices = @transform_1, window_bounds = array<i64: 128, 128>}, {transform_indices = @transform_2, window_bounds = array<i64: 8, 128>}]} {
    %c0_i32 = arith.constant 0 : i32
    %0 = arith.cmpi eq, %arg2, %c0_i32 : i32
    %1 = arith.extui %0 : i1 to i32
    %c0_i32_0 = arith.constant 0 : i32
    %2 = arith.cmpi ne, %1, %c0_i32_0 : i32
    scf.if %2 {
      %cst_10 = arith.constant 0.000000e+00 : f32
      %14 = vector.broadcast %cst_10 : f32 to vector<8x128xf32>
      %c0_11 = arith.constant 0 : index
      %c0_12 = arith.constant 0 : index
      %15 = vector.load %arg5[%c0_11, %c0_12] : memref<8x128xf32, #tpu.memory_space<vmem>>, vector<8x128xf32>
      tpu.vector_store %arg5[%c0_11, %c0_12], %14 {strides = array<i32>} : memref<8x128xf32, #tpu.memory_space<vmem>>, vector<8x128xf32>,
    } else {
    }
    %c0 = arith.constant 0 : index
    %c0_1 = arith.constant 0 : index
    %3 = vector.load %arg4[%c0, %c0_1] : memref<128x128xf32, #tpu.memory_space<vmem>>, vector<128x128xf32>
    %4 = math.exp %3 : vector<128x128xf32>
    %5 = arith.truncf %4 : vector<128x128xf32> to vector<128x128xbf16>
    %c0_2 = arith.constant 0 : index
    %c0_3 = arith.constant 0 : index
    %6 = vector.load %arg5[%c0_2, %c0_3] : memref<8x128xf32, #tpu.memory_space<vmem>>, vector<8x128xf32>
    %c0_4 = arith.constant 0 : index
    %c0_5 = arith.constant 0 : index
    %7 = vector.load %arg3[%c0_4, %c0_5] : memref<8x128xbf16, #tpu.memory_space<vmem>>, vector<8x128xbf16>
    %cst = arith.constant dense<0.000000e+00> : vector<8x128xf32>
    %8 = tpu.matmul %7, %5, %cst {dimension_numbers = #tpu.dot_dimension_numbers<[1], [0], [0], [1], [0, 0, 1, 1], [], []>} : vector<8x128xbf16>, vector<128x128xbf16>, vector<8x128xf32> -> vector<8x128xf32>
    %9 = arith.addf %6, %8 : vector<8x128xf32>
    %c0_6 = arith.constant 0 : index
    %c0_7 = arith.constant 0 : index
    %10 = vector.load %arg5[%c0_6, %c0_7] : memref<8x128xf32, #tpu.memory_space<vmem>>, vector<8x128xf32>
    tpu.vector_store %arg5[%c0_6, %c0_7], %9 {strides = array<i32>} : memref<8x128xf32, #tpu.memory_space<vmem>>, vector<8x128xf32>,
    %c0_i32_8 = arith.constant 0 : i32
    %11 = arith.cmpi eq, %arg2, %c0_i32_8 : i32
    %12 = arith.extui %11 : i1 to i32
    %c0_i32_9 = arith.constant 0 : i32
    %13 = arith.cmpi ne, %12, %c0_i32_9 : i32
    scf.if %13 {
      %c0_10 = arith.constant 0 : index
      %c0_11 = arith.constant 0 : index
      %14 = vector.load %arg5[%c0_10, %c0_11] : memref<8x128xf32, #tpu.memory_space<vmem>>, vector<8x128xf32>
      %cst_12 = arith.constant 0.000000e+00 : f32
      %cst_13 = arith.constant 1.000000e+00 : f32
      %15 = vector.broadcast %cst_12 : f32 to vector<8x128xf32>
      %16 = arith.maximumf %15, %14 : vector<8x128xf32>
      %17 = vector.broadcast %cst_13 : f32 to vector<8x128xf32>
      %18 = arith.minimumf %17, %16 : vector<8x128xf32>
      %c0_14 = arith.constant 0 : index
      %c0_15 = arith.constant 0 : index
      %19 = vector.load %arg5[%c0_14, %c0_15] : memref<8x128xf32, #tpu.memory_space<vmem>>, vector<8x128xf32>
      tpu.vector_store %arg5[%c0_14, %c0_15], %18 {strides = array<i32>} : memref<8x128xf32, #tpu.memory_space<vmem>>, vector<8x128xf32>,
    } else {
    }
    return
  }
  func.func @transform_0(%arg0: i32, %arg1: i32, %arg2: i32) -> (i32, i32) {
    %c0_i32 = arith.constant 0 : i32
    return %arg0, %arg2 : i32, i32
  }
  func.func @transform_1(%arg0: i32, %arg1: i32, %arg2: i32) -> (i32, i32) {
    %c0_i32 = arith.constant 0 : i32
    return %arg2, %arg1 : i32, i32
  }
  func.func @transform_2(%arg0: i32, %arg1: i32, %arg2: i32) -> (i32, i32) {
    %c0_i32 = arith.constant 0 : i32
    return %arg0, %arg1 : i32, i32
  }
}

</mosaic_0001>

<llo_original>
// kernel: tpu_custom_call.1
$region0: #{tpu_custom_call.1}
  #allocation0 [shape = 'u32[]', space=smem, size = 0x4, offset = 0x4, fixed_abs, tag = 'smem constant byte address 0x4 - core index']
  #allocation1 [shape = 'u32[144,128]{1,0:T(1,128)}', space=vmem, size = 0x12000, scoped, tag = 'internal scratch']
  %s0 = inlined_call_operand.hbm [shape: bf16[8,128], index: 0, kind: input, shape index: {}]
  %s1 = inlined_call_operand.hbm [shape: f32[128,128], index: 1, kind: input, shape index: {}]
  %s2 = inlined_call_operand.hbm [shape: f32[8,128], index: 2, kind: output, shape index: {}]
  %s3 = sld [smem:[#allocation0]]
  $region34: #{tpu_custom_call.1} parent=0
    _
  %s5 = ssub.s32 1, %s3
  %s6 = scalar_select 0, %s5, %s3
  $region1: #{tpu_custom_call.1} parent=0
    #allocation2 [shape = 'u8[2048]{0}', space=vmem, size = 0x800, scoped, tag = 'input window, operand 0, single buffered']
    #allocation3 [shape = 's32[1]{0}', space=sflag, size = 0x4, scoped, tag = 'scoped memory for tpu_custom_call.1']
    #allocation4 [shape = 's32[1]{0}', space=sflag, size = 0x4, scoped, tag = 'scoped memory for tpu_custom_call.1']
    #allocation5 [shape = 'u8[65536]{0}', space=vmem, size = 0x10000, scoped, tag = 'input window, operand 1, single buffered']
    #allocation6 [shape = 's32[1]{0}', space=sflag, size = 0x4, scoped, tag = 'scoped memory for tpu_custom_call.1']
    #allocation7 [shape = 'u8[4096]{0}', space=vmem, size = 0x1000, scoped, tag = 'output window, operand 0, single buffered']
    %7 = vsyncpa [#allocation3], 0
    %8 = vsyncpa [#allocation6], 0
    %9 = vsyncpa [#allocation4], 0
    // Predicated region
    $region2: #{tpu_custom_call.1} parent=1 // pred_check
      _
    $region3: #{tpu_custom_call.1} parent=1 // pred_check_branch
      %11 = sbr.rel (0) target = $region5
    $region4: #{tpu_custom_call.1} parent=1 // pred_region
      %s13 = ssub.s32 64, 64
      %14 = vsyncadd [#allocation3], %s13
      %s16 = sshll.u32 [#allocation2], 4
      %s17 = int_to_ptr.vmem [resolvable:$true] %s16
      %19 = dma.hbm_to_vmem [thread:$0]  %s0, 64, %s17, [#allocation3]
    $region5: #{tpu_custom_call.1} parent=1 // pred_fallthru
      _
    // Predicated region
    $region6: #{tpu_custom_call.1} parent=1 // pred_check
      _
    $region7: #{tpu_custom_call.1} parent=1 // pred_check_branch
      %21 = sbr.rel (0) target = $region9
    $region8: #{tpu_custom_call.1} parent=1 // pred_region
      %s23 = ssub.s32 2048, 2048
      %24 = vsyncadd [#allocation6], %s23
      %s25 = sshll.u32 [#allocation5], 4
      %s26 = int_to_ptr.vmem [resolvable:$true] %s25
      %31 = dma.hbm_to_vmem [thread:$0]  %s1, 2048, %s26, [#allocation6], 128, 128, 8
    $region9: #{tpu_custom_call.1} parent=1 // pred_fallthru
      _
    // Predicated region
    $region10: #{tpu_custom_call.1} parent=1 // pred_check
      _
    $region11: #{tpu_custom_call.1} parent=1 // pred_check_branch
      %33 = sbr.rel (0) target = $region13
    $region12: #{tpu_custom_call.1} parent=1 // pred_region
      %34 = dma.done [#allocation3], 64
    $region13: #{tpu_custom_call.1} parent=1 // pred_fallthru
      _
    // Predicated region
    $region14: #{tpu_custom_call.1} parent=1 // pred_check
      _
    $region15: #{tpu_custom_call.1} parent=1 // pred_check_branch
      %36 = sbr.rel (0) target = $region17
    $region16: #{tpu_custom_call.1} parent=1 // pred_region
      %37 = dma.done [#allocation6], 2048
    $region17: #{tpu_custom_call.1} parent=1 // pred_fallthru
      _
    %p39 = scmp.eq.s32.totalorder 0, 0
    // Predicated region
    $region18: #{tpu_custom_call.1} parent=1 // pred_check
      %p40 = pneg %p39
    $region19: #{tpu_custom_call.1} parent=1 // pred_check_branch
      %42 = sbr.rel (%p40) target = $region21
    $region20: #{tpu_custom_call.1} parent=1 // pred_region
      %43 = vst [vmem:[#allocation7] sm:$0xff] 0.0
    $region21: #{tpu_custom_call.1} parent=1 // pred_fallthru
      _
    %v44 = vld [vmem:[#allocation5] sm:$0xff]
    %v45 = vld [vmem:[#allocation5 + $0x8] sm:$0xff]
    %v46 = vld [vmem:[#allocation5 + $0x10] sm:$0xff]
    %v47 = vld [vmem:[#allocation5 + $0x18] sm:$0xff]
    %v48 = vld [vmem:[#allocation5 + $0x20] sm:$0xff]
    %v49 = vld [vmem:[#allocation5 + $0x28] sm:$0xff]
    %v50 = vld [vmem:[#allocation5 + $0x30] sm:$0xff]
    %v51 = vld [vmem:[#allocation5 + $0x38] sm:$0xff]
    %v52 = vld [vmem:[#allocation5 + $0x40] sm:$0xff]
    %v53 = vld [vmem:[#allocation5 + $0x48] sm:$0xff]
    %v54 = vld [vmem:[#allocation5 + $0x50] sm:$0xff]
    %v55 = vld [vmem:[#allocation5 + $0x58] sm:$0xff]
    %v56 = vld [vmem:[#allocation5 + $0x60] sm:$0xff]
    %v57 = vld [vmem:[#allocation5 + $0x68] sm:$0xff]
    %v58 = vld [vmem:[#allocation5 + $0x70] sm:$0xff]
    %v59 = vld [vmem:[#allocation5 + $0x78] sm:$0xff]
    %v60 = vmul.f32 %v44, 1.442695
    %v61 = vpow.pop %v60
    %v62 = vmul.f32 %v45, 1.442695
    %v63 = vpow.pop %v62
    %v64 = vmul.f32 %v46, 1.442695
    %v65 = vpow.pop %v64
    %v66 = vmul.f32 %v47, 1.442695
    %v67 = vpow.pop %v66
    %v68 = vmul.f32 %v48, 1.442695
    %v69 = vpow.pop %v68
    %v70 = vmul.f32 %v49, 1.442695
    %v71 = vpow.pop %v70
    %v72 = vmul.f32 %v50, 1.442695
    %v73 = vpow.pop %v72
    %v74 = vmul.f32 %v51, 1.442695
    %v75 = vpow.pop %v74
    %v76 = vmul.f32 %v52, 1.442695
    %v77 = vpow.pop %v76
    %v78 = vmul.f32 %v53, 1.442695
    %v79 = vpow.pop %v78
    %v80 = vmul.f32 %v54, 1.442695
    %v81 = vpow.pop %v80
    %v82 = vmul.f32 %v55, 1.442695
    %v83 = vpow.pop %v82
    %v84 = vmul.f32 %v56, 1.442695
    %v85 = vpow.pop %v84
    %v86 = vmul.f32 %v57, 1.442695
    %v87 = vpow.pop %v86
    %v88 = vmul.f32 %v58, 1.442695
    %v89 = vpow.pop %v88
    %v90 = vmul.f32 %v59, 1.442695
    %v91 = vpow.pop %v90
    %v92 = vpack.c.bf16 %v63, %v61
    %v93 = vpack.c.bf16 %v67, %v65
    %v94 = vpack.c.bf16 %v71, %v69
    %v95 = vpack.c.bf16 %v75, %v73
    %v96 = vpack.c.bf16 %v79, %v77
    %v97 = vpack.c.bf16 %v83, %v81
    %v98 = vpack.c.bf16 %v87, %v85
    %v99 = vpack.c.bf16 %v91, %v89
    %v100 = vld [vmem:[#allocation7] sm:$0xff]
    %v101 = vld [vmem:[#allocation2] sm:$0xf]
    %102 = vmatprep.subr.bf16.mxu0 0
    %103 = vmatpush1.bf16.msra.mxu0 %v92
    %104 = vmatprep.subr.bf16.mxu0 0
    %105 = vmatpush1.bf16.msra.mxu0 %v93
    %106 = vmatprep.subr.bf16.mxu0 0
    %107 = vmatpush1.bf16.msra.mxu0 %v94
    %108 = vmatprep.subr.bf16.mxu0 0
    %109 = vmatpush1.bf16.msra.mxu0 %v95
    %110 = vmatprep.subr.bf16.mxu0 0
    %111 = vmatpush1.bf16.msra.mxu0 %v96
    %112 = vmatprep.subr.bf16.mxu0 0
    %113 = vmatpush1.bf16.msra.mxu0 %v97
    %114 = vmatprep.subr.bf16.mxu0 0
    %115 = vmatpush1.bf16.msra.mxu0 %v98
    %116 = vmatprep.subr.bf16.mxu0 0
    %117 = vmatpush1.bf16.msra.mxu0 %v99
    %118 = vmatprep.subr.bf16.mxu0 0
    %119 = vmatpush1.bf16.msra.mxu0 0
    %120 = vmatprep.subr.bf16.mxu0 0
    %121 = vmatpush1.bf16.msra.mxu0 0
    %122 = vmatprep.subr.bf16.mxu0 0
    %123 = vmatpush1.bf16.msra.mxu0 0
    %124 = vmatprep.subr.bf16.mxu0 0
    %125 = vmatpush1.bf16.msra.mxu0 0
    %126 = vmatprep.subr.bf16.mxu0 0
    %127 = vmatpush1.bf16.msra.mxu0 0
    %128 = vmatprep.subr.bf16.mxu0 0
    %129 = vmatpush1.bf16.msra.mxu0 0
    %130 = vmatprep.subr.bf16.mxu0 0
    %131 = vmatpush1.bf16.msra.mxu0 0
    %132 = vmatprep.subr.bf16.mxu0 0
    %133 = vmatpush1.bf16.msra.mxu0 0
    %134 = vmatprep.mubr.bf16.mxu0 0
    %135 = vmatmul.mubr.bf16.gmra.mrb[0].mxu0 %v101
    %v136 = vpop.f32.mrb[0].mxu0
    %v137 = vadd.f32 0.0, %v136
    %v138 = vpop.f32.mrb[0].mxu0
    %v139 = vpop.f32.mrb[0].mxu0
    %v140 = vpop.f32.mrb[0].mxu0
    %141 = vdwg.mxu0
    %v142 = vadd.f32 %v100, %v137
    %143 = vst [vmem:[#allocation7] sm:$0xff] %v142
    // Predicated region
    $region22: #{tpu_custom_call.1} parent=1 // pred_check
      %p144 = pneg %p39
    $region23: #{tpu_custom_call.1} parent=1 // pred_check_branch
      %146 = sbr.rel (%p144) target = $region25
    $region24: #{tpu_custom_call.1} parent=1 // pred_region
      %v147 = vld [vmem:[#allocation7] sm:$0xff]
      %v148 = vmax.f32 %v147, 0.0
      %v149 = vmin.f32 %v148, 1.0
      %150 = vst [vmem:[#allocation7] sm:$0xff] %v149
    $region25: #{tpu_custom_call.1} parent=1 // pred_fallthru
      _
    // Predicated region
    $region26: #{tpu_custom_call.1} parent=1 // pred_check
      _
    $region27: #{tpu_custom_call.1} parent=1 // pred_check_branch
      %152 = sbr.rel (0) target = $region29
    $region28: #{tpu_custom_call.1} parent=1 // pred_region
      %s154 = ssub.s32 128, 128
      %155 = vsyncadd [#allocation4], %s154
      %s157 = sshll.u32 [#allocation7], 4
      %s158 = int_to_ptr.vmem [resolvable:$true] %s157
      %160 = dma.vmem_to_hbm [thread:$0]  %s158, 128, %s2, [#allocation4]
    $region29: #{tpu_custom_call.1} parent=1 // pred_fallthru
      _
    // Predicated region
    $region30: #{tpu_custom_call.1} parent=1 // pred_check
      _
    $region31: #{tpu_custom_call.1} parent=1 // pred_check_branch
      %162 = sbr.rel (0) target = $region33
    $region32: #{tpu_custom_call.1} parent=1 // pred_region
      %163 = dma.done [#allocation4], 128
    $region33: #{tpu_custom_call.1} parent=1 // pred_fallthru
      _
    %164 = vsyncpa [#allocation3], 1
    %165 = vsyncpa [#allocation6], 1
    %166 = vsyncpa [#allocation4], 1

</llo_original>
